<compile_context>
chip_gen: v6e
topology: v6e:2x2x1
jax: 0.10.0
libtpu: 0.0.40
codegen_flags: <defaults>
</compile_context>

<pallas_src>
import jax
import jax.numpy as jnp
from jax.experimental import pallas as pl
from jax.experimental.pallas import tpu as pltpu

N_NODES = 9          # labels 1..9, ring graph
IN_CH = 8            # [x, y, conf, label, dist_next, angle_next, dist_prev, angle_prev]
OUT_CH = 4
OUT_PAD = 128        # lane-dense output store (sliced back to OUT_CH on host)
ROW_ALIGN = 16       # sublane alignment valid for f32 (8) and packed bf16 (16)
IMG_W, IMG_H = 640.0, 480.0
MATMUL_DTYPE = jnp.bfloat16   # MXU operand dtype (f32 accumulation)


# ----------------------------------------------------------------------------
# Graph-construction glue (plain JAX, tiny shapes, vmapped over the batch)
# ----------------------------------------------------------------------------
def fill_and_sort_keypoints(kps):
    # kps: (9, 4) with a complete label set 1..9 -> order by label.
    order = jnp.argsort(kps[:, 3])
    return kps[order]


def normalize_keypoints(kps, image_width, image_height):
    x = (kps[:, 0] - image_width / 2.0) / (image_width / 2.0)
    y = (kps[:, 1] - image_height / 2.0) / (image_height / 2.0)
    return kps.at[:, 0].set(x).at[:, 1].set(y)


def keypoints_to_node_features(kps):
    # kps: (9, 4) normalized [x, y, conf, label]
    xy = kps[:, :2]
    nxt = jnp.roll(xy, -1, axis=0)   # keypoints[(i+1) % n]
    prv = jnp.roll(xy, 1, axis=0)    # keypoints[i-1]
    d_next = nxt - xy
    d_prev = prv - xy
    dist_next = jnp.sqrt(jnp.sum(d_next ** 2, axis=-1))
    angle_next = jnp.arctan2(d_next[:, 1], d_next[:, 0])
    dist_prev = jnp.sqrt(jnp.sum(d_prev ** 2, axis=-1))
    angle_prev = jnp.arctan2(d_prev[:, 1], d_prev[:, 0])
    return jnp.concatenate(
        [kps,
         dist_next[:, None], angle_next[:, None],
         dist_prev[:, None], angle_prev[:, None]],
        axis=1).astype(jnp.float32)


# ----------------------------------------------------------------------------
# Pallas kernel: batched GCN_SAGE_HYBRID (sequential) forward, one invocation
# ----------------------------------------------------------------------------
def gnn_kernel(x_ref, mfirst_ref, mlast_ref,
               w1_ref, b1_ref,
               w2_ref, b2_ref,
               w3_ref, b3_ref,
               w4_ref, b4_ref,
               w5_ref, b5_ref,
               out_ref):
    f32 = jnp.float32
    x = x_ref[...]                 # (M_pad, IN_CH) f32, rows grouped 9-per-graph
    mf = mfirst_ref[...]           # (M_pad, 1) 1.0 where node_in_graph == 0
    ml = mlast_ref[...]            # (M_pad, 1) 1.0 where node_in_graph == 8
    not_mf = 1.0 - mf              # hoisted once, reused by every layer
    not_ml = 1.0 - ml

    def ring_neighbors(h):
        # Ring next/prev neighbor within each contiguous 9-row graph block.
        # Interior rows use the global +/-1 roll; the per-graph boundary row is
        # patched with a +/-8 roll (wraps to the other end of the SAME graph).
        nxt = ml * jnp.roll(h, 8, axis=0) + not_ml * jnp.roll(h, -1, axis=0)
        prv = mf * jnp.roll(h, -8, axis=0) + not_mf * jnp.roll(h, 1, axis=0)
        return nxt, prv

    # --- SAGEConv 1: lin_l(mean_j x_j) + lin_r(x_i) -> fused single matmul ----
    nxt, prv = ring_neighbors(x)
    agg = (nxt + prv) * 0.5
    z = jnp.concatenate([agg, x], axis=-1).astype(MATMUL_DTYPE)
    h = jnp.dot(z, w1_ref[...], preferred_element_type=f32) + b1_ref[...]
    h = jnp.maximum(h, 0.0)        # dropout (eval) == identity

    # --- SAGEConv 2 -----------------------------------------------------------
    nxt, prv = ring_neighbors(h)
    agg = (nxt + prv) * 0.5
    z = jnp.concatenate([agg, h], axis=-1).astype(MATMUL_DTYPE)
    h = jnp.dot(z, w2_ref[...], preferred_element_type=f32) + b2_ref[...]
    h = jnp.maximum(h, 0.0)

    # --- GCNConv 1: A_hat @ h @ W + b ; A_hat = (A + I)/3 (degree-3 ring) -----
    nxt, prv = ring_neighbors(h)
    g = ((h + nxt + prv) * (1.0 / 3.0)).astype(MATMUL_DTYPE)
    h = jnp.dot(g, w3_ref[...], preferred_element_type=f32) + b3_ref[...]
    h = jnp.maximum(h, 0.0)

    # --- GCNConv 2 ------------------------------------------------------------
    nxt, prv = ring_neighbors(h)
    g = ((h + nxt + prv) * (1.0 / 3.0)).astype(MATMUL_DTYPE)
    h = jnp.dot(g, w4_ref[...], preferred_element_type=f32) + b4_ref[...]
    h = jnp.maximum(h, 0.0)

    # --- Final Linear (output columns zero-padded to OUT_PAD lanes) ----------
    out = jnp.dot(h.astype(MATMUL_DTYPE), w5_ref[...],
                  preferred_element_type=f32) + b5_ref[...]
    out_ref[...] = out.astype(out_ref.dtype)


def gnn_forward(x_nodes, fused_params):
    """x_nodes: (B, N, IN_CH) float32 -> (B, N, OUT_CH) float32."""
    B, N, Fin = x_nodes.shape
    M = B * N
    M_pad = ((M + ROW_ALIGN - 1) // ROW_ALIGN) * ROW_ALIGN   # sublane-align rows

    x2 = jnp.pad(x_nodes.reshape(M, Fin), ((0, M_pad - M), (0, 0)))
    node_idx = jnp.arange(M_pad) % N
    mask_first = (node_idx == 0).astype(jnp.float32)[:, None]       # (M_pad, 1)
    mask_last = (node_idx == N - 1).astype(jnp.float32)[:, None]    # (M_pad, 1)

    args = (x2, mask_first, mask_last,
            fused_params["w1"], fused_params["b1"],
            fused_params["w2"], fused_params["b2"],
            fused_params["w3"], fused_params["b3"],
            fused_params["w4"], fused_params["b4"],
            fused_params["w5"], fused_params["b5"])

    vmem = pl.BlockSpec(memory_space=pltpu.MemorySpace.VMEM)
    out = pl.pallas_call(
        gnn_kernel,
        out_shape=jax.ShapeDtypeStruct((M_pad, OUT_PAD), jnp.float32),
        in_specs=[vmem] * len(args),
        out_specs=vmem,
    )(*args)

    return out[:M, :OUT_CH].reshape(B, N, OUT_CH)


# ----------------------------------------------------------------------------
# Parameters: GCN_SAGE_HYBRID(8, h1, h2, 4, parallel=False), eval mode
# ----------------------------------------------------------------------------
def init_params(key, in_ch, h1, h2, out_ch):
    keys = jax.random.split(key, 9)

    def lin(k, fan_in, fan_out):
        scale = 1.0 / jnp.sqrt(jnp.float32(fan_in))
        return jax.random.normal(k, (fan_in, fan_out), jnp.float32) * scale

    return dict(
        # SAGE1: in_ch -> h1   (lin_l has bias, lin_r no bias; matches PyG)
        w1l=lin(keys[0], in_ch, h1), w1r=lin(keys[1], in_ch, h1),
        b1=jnp.zeros((1, h1), jnp.float32),
        # SAGE2: h1 -> h1
        w2l=lin(keys[2], h1, h1), w2r=lin(keys[3], h1, h1),
        b2=jnp.zeros((1, h1), jnp.float32),
        # GCN1: h1 -> h2
        w3=lin(keys[4], h1, h2), b3=jnp.zeros((1, h2), jnp.float32),
        # GCN2: h2 -> h2
        w4=lin(keys[5], h2, h2), b4=jnp.zeros((1, h2), jnp.float32),
        # FC: h2 -> out_ch
        w5=lin(keys[6], h2, out_ch), b5=jnp.zeros((1, out_ch), jnp.float32),
    )


def fuse_params(params):
    """Pre-fuse SAGE lin_l/lin_r, pad FC output to OUT_PAD lanes, cast matmul
    operands to bf16 (biases f32)."""
    h2, out_ch = params["w5"].shape
    w5_pad = jnp.pad(params["w5"], ((0, 0), (0, OUT_PAD - out_ch)))
    b5_pad = jnp.pad(params["b5"], ((0, 0), (0, OUT_PAD - out_ch)))
    return dict(
        w1=jnp.concatenate([params["w1l"], params["w1r"]], axis=0).astype(MATMUL_DTYPE),
        b1=params["b1"].astype(jnp.float32),
        w2=jnp.concatenate([params["w2l"], params["w2r"]], axis=0).astype(MATMUL_DTYPE),
        b2=params["b2"].astype(jnp.float32),
        w3=params["w3"].astype(MATMUL_DTYPE), b3=params["b3"].astype(jnp.float32),
        w4=params["w4"].astype(MATMUL_DTYPE), b4=params["b4"].astype(jnp.float32),
        w5=w5_pad.astype(MATMUL_DTYPE), b5=b5_pad.astype(jnp.float32),
    )


# ----------------------------------------------------------------------------
# End-to-end pipeline (keypoints -> graphs -> GNN predictions)
# ----------------------------------------------------------------------------
def keypoint_pipeline(pred_keypoints_batch, fused_params):
    # pred_keypoints_batch: (B, 9, 4) raw detector keypoints [x, y, conf, label]
    def per_image(kps):
        kp = fill_and_sort_keypoints(kps)
        kp = normalize_keypoints(kp, IMG_W, IMG_H)
        return keypoints_to_node_features(kp)

    x_nodes = jax.vmap(per_image)(pred_keypoints_batch)   # (B, 9, 8)
    return gnn_forward(x_nodes, fused_params)


# ----------------------------------------------------------------------------
# Pure-JAX reference (same bf16/f32 numerics) for correctness checking
# ----------------------------------------------------------------------------
def gnn_reference(x_nodes, fused):
    def per_graph(x):   # (9, IN_CH)
        def ring(h):
            return jnp.roll(h, -1, axis=0), jnp.roll(h, 1, axis=0)

        def sage(h, w, b):
            nxt, prv = ring(h)
            z = jnp.concatenate([(nxt + prv) * 0.5, h], axis=-1).astype(MATMUL_DTYPE)
            return jnp.maximum(
                jnp.dot(z, w, preferred_element_type=jnp.float32) + b, 0.0)

        def gcn(h, w, b):
            nxt, prv = ring(h)
            g = ((h + nxt + prv) * (1.0 / 3.0)).astype(MATMUL_DTYPE)
            return jnp.maximum(
                jnp.dot(g, w, preferred_element_type=jnp.float32) + b, 0.0)

        h = sage(x, fused["w1"], fused["b1"])
        h = sage(h, fused["w2"], fused["b2"])
        h = gcn(h, fused["w3"], fused["b3"])
        h = gcn(h, fused["w4"], fused["b4"])
        out = jnp.dot(h.astype(MATMUL_DTYPE), fused["w5"],
                      preferred_element_type=jnp.float32) + fused["b5"]
        return out[:, :OUT_CH]

    return jax.vmap(per_graph)(x_nodes)


if __name__ == "__main__":
    key = jax.random.PRNGKey(0)
    B = 2
    hidden1, hidden2 = 128, 128   # small synthetic sizes (module default: 1024, 512)

    kp_key, param_key = jax.random.split(key)
    k1, k2, k3 = jax.random.split(kp_key, 3)
    xs = jax.random.uniform(k1, (B, N_NODES, 1), minval=0.0, maxval=IMG_W)
    ys = jax.random.uniform(k2, (B, N_NODES, 1), minval=0.0, maxval=IMG_H)
    conf = jax.random.uniform(k3, (B, N_NODES, 1))
    labels = jnp.tile(
        jnp.arange(1, N_NODES + 1, dtype=jnp.float32)[None, :, None], (B, 1, 1))
    pred_keypoints = jnp.concatenate([xs, ys, conf, labels], axis=-1)  # (B, 9, 4)

    params = init_params(param_key, IN_CH, hidden1, hidden2, OUT_CH)
    fused = fuse_params(params)

    pipeline = jax.jit(keypoint_pipeline)
    preds = pipeline(pred_keypoints, fused)          # (B, 9, 4)
    preds = jax.block_until_ready(preds)

    # Correctness check against a pure-JAX reference with matching numerics.
    def per_image(kps):
        kp = fill_and_sort_keypoints(kps)
        kp = normalize_keypoints(kp, IMG_W, IMG_H)
        return keypoints_to_node_features(kp)

    x_nodes_ref = jax.vmap(per_image)(pred_keypoints)
    ref = jax.block_until_ready(gnn_reference(x_nodes_ref, fused))

    assert preds.shape == (B, N_NODES, OUT_CH)
    assert bool(jnp.all(jnp.isfinite(preds)))
    assert bool(jnp.allclose(preds, ref, rtol=5e-2, atol=5e-2))
    print("KERNEL_OK")
</pallas_src>

<mosaic_0001>
module attributes {stable_mosaic.version = 11 : i64} {
  func.func @gnn_kernel(%arg0: memref<32x8xf32, #tpu.memory_space<vmem>>, %arg1: memref<32x1xf32, #tpu.memory_space<vmem>>, %arg2: memref<32x1xf32, #tpu.memory_space<vmem>>, %arg3: memref<16x128xbf16, #tpu.memory_space<vmem>>, %arg4: memref<1x128xf32, #tpu.memory_space<vmem>>, %arg5: memref<256x128xbf16, #tpu.memory_space<vmem>>, %arg6: memref<1x128xf32, #tpu.memory_space<vmem>>, %arg7: memref<128x128xbf16, #tpu.memory_space<vmem>>, %arg8: memref<1x128xf32, #tpu.memory_space<vmem>>, %arg9: memref<128x128xbf16, #tpu.memory_space<vmem>>, %arg10: memref<1x128xf32, #tpu.memory_space<vmem>>, %arg11: memref<128x128xbf16, #tpu.memory_space<vmem>>, %arg12: memref<1x128xf32, #tpu.memory_space<vmem>>, %arg13: memref<32x128xf32, #tpu.memory_space<vmem>>) attributes {dimension_semantics = [], scalar_prefetch = 0 : i64, scratch_operands = 0 : i64, tpu.core_type = #tpu.core_type<tc>} {
    %c0 = arith.constant 0 : index
    %c0_0 = arith.constant 0 : index
    %0 = vector.load %arg0[%c0, %c0_0] : memref<32x8xf32, #tpu.memory_space<vmem>>, vector<32x8xf32>
    %c0_1 = arith.constant 0 : index
    %c0_2 = arith.constant 0 : index
    %1 = vector.load %arg1[%c0_1, %c0_2] : memref<32x1xf32, #tpu.memory_space<vmem>>, vector<32x1xf32>
    %c0_3 = arith.constant 0 : index
    %c0_4 = arith.constant 0 : index
    %2 = vector.load %arg2[%c0_3, %c0_4] : memref<32x1xf32, #tpu.memory_space<vmem>>, vector<32x1xf32>
    %cst = arith.constant 1.000000e+00 : f32
    %3 = vector.broadcast %cst : f32 to vector<32x1xf32>
    %4 = arith.subf %3, %1 : vector<32x1xf32>
    %cst_5 = arith.constant 1.000000e+00 : f32
    %5 = vector.broadcast %cst_5 : f32 to vector<32x1xf32>
    %6 = arith.subf %5, %2 : vector<32x1xf32>
    %7 = vector.extract_strided_slice %0 {offsets = [24, 0], sizes = [8, 8], strides = [1, 1]} : vector<32x8xf32> to vector<8x8xf32>
    %8 = vector.extract_strided_slice %0 {offsets = [0, 0], sizes = [24, 8], strides = [1, 1]} : vector<32x8xf32> to vector<24x8xf32>
    %9 = tpu.concatenate %7, %8 in 0 : vector<8x8xf32>, vector<24x8xf32> -> vector<32x8xf32>
    %10 = vector.broadcast %2 : vector<32x1xf32> to vector<32x8xf32>
    %11 = arith.mulf %10, %9 : vector<32x8xf32>
    %12 = vector.extract_strided_slice %0 {offsets = [1, 0], sizes = [31, 8], strides = [1, 1]} : vector<32x8xf32> to vector<31x8xf32>
    %13 = vector.extract_strided_slice %0 {offsets = [0, 0], sizes = [1, 8], strides = [1, 1]} : vector<32x8xf32> to vector<1x8xf32>
    %14 = tpu.concatenate %12, %13 in 0 : vector<31x8xf32>, vector<1x8xf32> -> vector<32x8xf32>
    %15 = vector.broadcast %6 : vector<32x1xf32> to vector<32x8xf32>
    %16 = arith.mulf %15, %14 : vector<32x8xf32>
    %17 = arith.addf %11, %16 : vector<32x8xf32>
    %18 = vector.extract_strided_slice %0 {offsets = [8, 0], sizes = [24, 8], strides = [1, 1]} : vector<32x8xf32> to vector<24x8xf32>
    %19 = vector.extract_strided_slice %0 {offsets = [0, 0], sizes = [8, 8], strides = [1, 1]} : vector<32x8xf32> to vector<8x8xf32>
    %20 = tpu.concatenate %18, %19 in 0 : vector<24x8xf32>, vector<8x8xf32> -> vector<32x8xf32>
    %21 = vector.broadcast %1 : vector<32x1xf32> to vector<32x8xf32>
    %22 = arith.mulf %21, %20 : vector<32x8xf32>
    %23 = vector.extract_strided_slice %0 {offsets = [31, 0], sizes = [1, 8], strides = [1, 1]} : vector<32x8xf32> to vector<1x8xf32>
    %24 = vector.extract_strided_slice %0 {offsets = [0, 0], sizes = [31, 8], strides = [1, 1]} : vector<32x8xf32> to vector<31x8xf32>
    %25 = tpu.concatenate %23, %24 in 0 : vector<1x8xf32>, vector<31x8xf32> -> vector<32x8xf32>
    %26 = vector.broadcast %4 : vector<32x1xf32> to vector<32x8xf32>
    %27 = arith.mulf %26, %25 : vector<32x8xf32>
    %28 = arith.addf %22, %27 : vector<32x8xf32>
    %29 = arith.addf %17, %28 : vector<32x8xf32>
    %cst_6 = arith.constant 5.000000e-01 : f32
    %30 = vector.broadcast %cst_6 : f32 to vector<32x8xf32>
    %31 = arith.mulf %29, %30 : vector<32x8xf32>
    %32 = tpu.concatenate %31, %0 in 1 : vector<32x8xf32>, vector<32x8xf32> -> vector<32x16xf32>
    %33 = arith.truncf %32 : vector<32x16xf32> to vector<32x16xbf16>
    %c0_7 = arith.constant 0 : index
    %c0_8 = arith.constant 0 : index
    %34 = vector.load %arg3[%c0_7, %c0_8] : memref<16x128xbf16, #tpu.memory_space<vmem>>, vector<16x128xbf16>
    %cst_9 = arith.constant dense<0.000000e+00> : vector<32x128xf32>
    %35 = tpu.matmul %33, %34, %cst_9 {dimension_numbers = #tpu.dot_dimension_numbers<[1], [0], [0], [1], [0, 0, 1, 1], [], []>} : vector<32x16xbf16>, vector<16x128xbf16>, vector<32x128xf32> -> vector<32x128xf32>
    %c0_10 = arith.constant 0 : index
    %c0_11 = arith.constant 0 : index
    %36 = vector.load %arg4[%c0_10, %c0_11] : memref<1x128xf32, #tpu.memory_space<vmem>>, vector<1x128xf32>
    %37 = vector.broadcast %36 : vector<1x128xf32> to vector<32x128xf32>
    %38 = arith.addf %35, %37 : vector<32x128xf32>
    %cst_12 = arith.constant 0.000000e+00 : f32
    %39 = vector.broadcast %cst_12 : f32 to vector<32x128xf32>
    %40 = arith.maximumf %38, %39 : vector<32x128xf32>
    %41 = vector.extract_strided_slice %40 {offsets = [24, 0], sizes = [8, 128], strides = [1, 1]} : vector<32x128xf32> to vector<8x128xf32>
    %42 = vector.extract_strided_slice %40 {offsets = [0, 0], sizes = [24, 128], strides = [1, 1]} : vector<32x128xf32> to vector<24x128xf32>
    %43 = tpu.concatenate %41, %42 in 0 : vector<8x128xf32>, vector<24x128xf32> -> vector<32x128xf32>
    %44 = vector.broadcast %2 : vector<32x1xf32> to vector<32x128xf32>
    %45 = arith.mulf %44, %43 : vector<32x128xf32>
    %46 = vector.extract_strided_slice %40 {offsets = [1, 0], sizes = [31, 128], strides = [1, 1]} : vector<32x128xf32> to vector<31x128xf32>
    %47 = vector.extract_strided_slice %40 {offsets = [0, 0], sizes = [1, 128], strides = [1, 1]} : vector<32x128xf32> to vector<1x128xf32>
    %48 = tpu.concatenate %46, %47 in 0 : vector<31x128xf32>, vector<1x128xf32> -> vector<32x128xf32>
    %49 = vector.broadcast %6 : vector<32x1xf32> to vector<32x128xf32>
    %50 = arith.mulf %49, %48 : vector<32x128xf32>
    %51 = arith.addf %45, %50 : vector<32x128xf32>
    %52 = vector.extract_strided_slice %40 {offsets = [8, 0], sizes = [24, 128], strides = [1, 1]} : vector<32x128xf32> to vector<24x128xf32>
    %53 = vector.extract_strided_slice %40 {offsets = [0, 0], sizes = [8, 128], strides = [1, 1]} : vector<32x128xf32> to vector<8x128xf32>
    %54 = tpu.concatenate %52, %53 in 0 : vector<24x128xf32>, vector<8x128xf32> -> vector<32x128xf32>
    %55 = vector.broadcast %1 : vector<32x1xf32> to vector<32x128xf32>
    %56 = arith.mulf %55, %54 : vector<32x128xf32>
    %57 = vector.extract_strided_slice %40 {offsets = [31, 0], sizes = [1, 128], strides = [1, 1]} : vector<32x128xf32> to vector<1x128xf32>
    %58 = vector.extract_strided_slice %40 {offsets = [0, 0], sizes = [31, 128], strides = [1, 1]} : vector<32x128xf32> to vector<31x128xf32>
    %59 = tpu.concatenate %57, %58 in 0 : vector<1x128xf32>, vector<31x128xf32> -> vector<32x128xf32>
    %60 = vector.broadcast %4 : vector<32x1xf32> to vector<32x128xf32>
    %61 = arith.mulf %60, %59 : vector<32x128xf32>
    %62 = arith.addf %56, %61 : vector<32x128xf32>
    %63 = arith.addf %51, %62 : vector<32x128xf32>
    %cst_13 = arith.constant 5.000000e-01 : f32
    %64 = vector.broadcast %cst_13 : f32 to vector<32x128xf32>
    %65 = arith.mulf %63, %64 : vector<32x128xf32>
    %66 = tpu.concatenate %65, %40 in 1 : vector<32x128xf32>, vector<32x128xf32> -> vector<32x256xf32>
    %67 = arith.truncf %66 : vector<32x256xf32> to vector<32x256xbf16>
    %c0_14 = arith.constant 0 : index
    %c0_15 = arith.constant 0 : index
    %68 = vector.load %arg5[%c0_14, %c0_15] : memref<256x128xbf16, #tpu.memory_space<vmem>>, vector<256x128xbf16>
    %cst_16 = arith.constant dense<0.000000e+00> : vector<32x128xf32>
    %69 = tpu.matmul %67, %68, %cst_16 {dimension_numbers = #tpu.dot_dimension_numbers<[1], [0], [0], [1], [0, 0, 1, 1], [], []>} : vector<32x256xbf16>, vector<256x128xbf16>, vector<32x128xf32> -> vector<32x128xf32>
    %c0_17 = arith.constant 0 : index
    %c0_18 = arith.constant 0 : index
    %70 = vector.load %arg6[%c0_17, %c0_18] : memref<1x128xf32, #tpu.memory_space<vmem>>, vector<1x128xf32>
    %71 = vector.broadcast %70 : vector<1x128xf32> to vector<32x128xf32>
    %72 = arith.addf %69, %71 : vector<32x128xf32>
    %cst_19 = arith.constant 0.000000e+00 : f32
    %73 = vector.broadcast %cst_19 : f32 to vector<32x128xf32>
    %74 = arith.maximumf %72, %73 : vector<32x128xf32>
    %75 = vector.extract_strided_slice %74 {offsets = [24, 0], sizes = [8, 128], strides = [1, 1]} : vector<32x128xf32> to vector<8x128xf32>
    %76 = vector.extract_strided_slice %74 {offsets = [0, 0], sizes = [24, 128], strides = [1, 1]} : vector<32x128xf32> to vector<24x128xf32>
    %77 = tpu.concatenate %75, %76 in 0 : vector<8x128xf32>, vector<24x128xf32> -> vector<32x128xf32>
    %78 = vector.broadcast %2 : vector<32x1xf32> to vector<32x128xf32>
    %79 = arith.mulf %78, %77 : vector<32x128xf32>
    %80 = vector.extract_strided_slice %74 {offsets = [1, 0], sizes = [31, 128], strides = [1, 1]} : vector<32x128xf32> to vector<31x128xf32>
    %81 = vector.extract_strided_slice %74 {offsets = [0, 0], sizes = [1, 128], strides = [1, 1]} : vector<32x128xf32> to vector<1x128xf32>
    %82 = tpu.concatenate %80, %81 in 0 : vector<31x128xf32>, vector<1x128xf32> -> vector<32x128xf32>
    %83 = vector.broadcast %6 : vector<32x1xf32> to vector<32x128xf32>
    %84 = arith.mulf %83, %82 : vector<32x128xf32>
    %85 = arith.addf %79, %84 : vector<32x128xf32>
    %86 = vector.extract_strided_slice %74 {offsets = [8, 0], sizes = [24, 128], strides = [1, 1]} : vector<32x128xf32> to vector<24x128xf32>
    %87 = vector.extract_strided_slice %74 {offsets = [0, 0], sizes = [8, 128], strides = [1, 1]} : vector<32x128xf32> to vector<8x128xf32>
    %88 = tpu.concatenate %86, %87 in 0 : vector<24x128xf32>, vector<8x128xf32> -> vector<32x128xf32>
    %89 = vector.broadcast %1 : vector<32x1xf32> to vector<32x128xf32>
    %90 = arith.mulf %89, %88 : vector<32x128xf32>
    %91 = vector.extract_strided_slice %74 {offsets = [31, 0], sizes = [1, 128], strides = [1, 1]} : vector<32x128xf32> to vector<1x128xf32>
    %92 = vector.extract_strided_slice %74 {offsets = [0, 0], sizes = [31, 128], strides = [1, 1]} : vector<32x128xf32> to vector<31x128xf32>
    %93 = tpu.concatenate %91, %92 in 0 : vector<1x128xf32>, vector<31x128xf32> -> vector<32x128xf32>
    %94 = vector.broadcast %4 : vector<32x1xf32> to vector<32x128xf32>
    %95 = arith.mulf %94, %93 : vector<32x128xf32>
    %96 = arith.addf %90, %95 : vector<32x128xf32>
    %97 = arith.addf %74, %85 : vector<32x128xf32>
    %98 = arith.addf %97, %96 : vector<32x128xf32>
    %cst_20 = arith.constant 0.333333343 : f32
    %99 = vector.broadcast %cst_20 : f32 to vector<32x128xf32>
    %100 = arith.mulf %98, %99 : vector<32x128xf32>
    %101 = arith.truncf %100 : vector<32x128xf32> to vector<32x128xbf16>
    %c0_21 = arith.constant 0 : index
    %c0_22 = arith.constant 0 : index
    %102 = vector.load %arg7[%c0_21, %c0_22] : memref<128x128xbf16, #tpu.memory_space<vmem>>, vector<128x128xbf16>
    %cst_23 = arith.constant dense<0.000000e+00> : vector<32x128xf32>
    %103 = tpu.matmul %101, %102, %cst_23 {dimension_numbers = #tpu.dot_dimension_numbers<[1], [0], [0], [1], [0, 0, 1, 1], [], []>} : vector<32x128xbf16>, vector<128x128xbf16>, vector<32x128xf32> -> vector<32x128xf32>
    %c0_24 = arith.constant 0 : index
    %c0_25 = arith.constant 0 : index
    %104 = vector.load %arg8[%c0_24, %c0_25] : memref<1x128xf32, #tpu.memory_space<vmem>>, vector<1x128xf32>
    %105 = vector.broadcast %104 : vector<1x128xf32> to vector<32x128xf32>
    %106 = arith.addf %103, %105 : vector<32x128xf32>
    %cst_26 = arith.constant 0.000000e+00 : f32
    %107 = vector.broadcast %cst_26 : f32 to vector<32x128xf32>
    %108 = arith.maximumf %106, %107 : vector<32x128xf32>
    %109 = vector.extract_strided_slice %108 {offsets = [24, 0], sizes = [8, 128], strides = [1, 1]} : vector<32x128xf32> to vector<8x128xf32>
    %110 = vector.extract_strided_slice %108 {offsets = [0, 0], sizes = [24, 128], strides = [1, 1]} : vector<32x128xf32> to vector<24x128xf32>
    %111 = tpu.concatenate %109, %110 in 0 : vector<8x128xf32>, vector<24x128xf32> -> vector<32x128xf32>
    %112 = vector.broadcast %2 : vector<32x1xf32> to vector<32x128xf32>
    %113 = arith.mulf %112, %111 : vector<32x128xf32>
    %114 = vector.extract_strided_slice %108 {offsets = [1, 0], sizes = [31, 128], strides = [1, 1]} : vector<32x128xf32> to vector<31x128xf32>
    %115 = vector.extract_strided_slice %108 {offsets = [0, 0], sizes = [1, 128], strides = [1, 1]} : vector<32x128xf32> to vector<1x128xf32>
    %116 = tpu.concatenate %114, %115 in 0 : vector<31x128xf32>, vector<1x128xf32> -> vector<32x128xf32>
    %117 = vector.broadcast %6 : vector<32x1xf32> to vector<32x128xf32>
    %118 = arith.mulf %117, %116 : vector<32x128xf32>
    %119 = arith.addf %113, %118 : vector<32x128xf32>
    %120 = vector.extract_strided_slice %108 {offsets = [8, 0], sizes = [24, 128], strides = [1, 1]} : vector<32x128xf32> to vector<24x128xf32>
    %121 = vector.extract_strided_slice %108 {offsets = [0, 0], sizes = [8, 128], strides = [1, 1]} : vector<32x128xf32> to vector<8x128xf32>
    %122 = tpu.concatenate %120, %121 in 0 : vector<24x128xf32>, vector<8x128xf32> -> vector<32x128xf32>
    %123 = vector.broadcast %1 : vector<32x1xf32> to vector<32x128xf32>
    %124 = arith.mulf %123, %122 : vector<32x128xf32>
    %125 = vector.extract_strided_slice %108 {offsets = [31, 0], sizes = [1, 128], strides = [1, 1]} : vector<32x128xf32> to vector<1x128xf32>
    %126 = vector.extract_strided_slice %108 {offsets = [0, 0], sizes = [31, 128], strides = [1, 1]} : vector<32x128xf32> to vector<31x128xf32>
    %127 = tpu.concatenate %125, %126 in 0 : vector<1x128xf32>, vector<31x128xf32> -> vector<32x128xf32>
    %128 = vector.broadcast %4 : vector<32x1xf32> to vector<32x128xf32>
    %129 = arith.mulf %128, %127 : vector<32x128xf32>
    %130 = arith.addf %124, %129 : vector<32x128xf32>
    %131 = arith.addf %108, %119 : vector<32x128xf32>
    %132 = arith.addf %131, %130 : vector<32x128xf32>
    %cst_27 = arith.constant 0.333333343 : f32
    %133 = vector.broadcast %cst_27 : f32 to vector<32x128xf32>
    %134 = arith.mulf %132, %133 : vector<32x128xf32>
    %135 = arith.truncf %134 : vector<32x128xf32> to vector<32x128xbf16>
    %c0_28 = arith.constant 0 : index
    %c0_29 = arith.constant 0 : index
    %136 = vector.load %arg9[%c0_28, %c0_29] : memref<128x128xbf16, #tpu.memory_space<vmem>>, vector<128x128xbf16>
    %cst_30 = arith.constant dense<0.000000e+00> : vector<32x128xf32>
    %137 = tpu.matmul %135, %136, %cst_30 {dimension_numbers = #tpu.dot_dimension_numbers<[1], [0], [0], [1], [0, 0, 1, 1], [], []>} : vector<32x128xbf16>, vector<128x128xbf16>, vector<32x128xf32> -> vector<32x128xf32>
    %c0_31 = arith.constant 0 : index
    %c0_32 = arith.constant 0 : index
    %138 = vector.load %arg10[%c0_31, %c0_32] : memref<1x128xf32, #tpu.memory_space<vmem>>, vector<1x128xf32>
    %139 = vector.broadcast %138 : vector<1x128xf32> to vector<32x128xf32>
    %140 = arith.addf %137, %139 : vector<32x128xf32>
    %cst_33 = arith.constant 0.000000e+00 : f32
    %141 = vector.broadcast %cst_33 : f32 to vector<32x128xf32>
    %142 = arith.maximumf %140, %141 : vector<32x128xf32>
    %143 = arith.truncf %142 : vector<32x128xf32> to vector<32x128xbf16>
    %c0_34 = arith.constant 0 : index
    %c0_35 = arith.constant 0 : index
    %144 = vector.load %arg11[%c0_34, %c0_35] : memref<128x128xbf16, #tpu.memory_space<vmem>>, vector<128x128xbf16>
    %cst_36 = arith.constant dense<0.000000e+00> : vector<32x128xf32>
    %145 = tpu.matmul %143, %144, %cst_36 {dimension_numbers = #tpu.dot_dimension_numbers<[1], [0], [0], [1], [0, 0, 1, 1], [], []>} : vector<32x128xbf16>, vector<128x128xbf16>, vector<32x128xf32> -> vector<32x128xf32>
    %c0_37 = arith.constant 0 : index
    %c0_38 = arith.constant 0 : index
    %146 = vector.load %arg12[%c0_37, %c0_38] : memref<1x128xf32, #tpu.memory_space<vmem>>, vector<1x128xf32>
    %147 = vector.broadcast %146 : vector<1x128xf32> to vector<32x128xf32>
    %148 = arith.addf %145, %147 : vector<32x128xf32>
    %c0_39 = arith.constant 0 : index
    %c0_40 = arith.constant 0 : index
    %149 = vector.load %arg13[%c0_39, %c0_40] : memref<32x128xf32, #tpu.memory_space<vmem>>, vector<32x128xf32>
    tpu.vector_store %arg13[%c0_39, %c0_40], %148 {strides = array<i32>} : memref<32x128xf32, #tpu.memory_space<vmem>>, vector<32x128xf32>,
    return
  }
}

</mosaic_0001>

<llo_original>
// kernel: keypoint_pipeline.1
$region0: #{keypoint_pipeline.1}
  #allocation0 [shape = 'u32[]', space=smem, size = 0x4, offset = 0x4, fixed_abs, tag = 'smem constant byte address 0x4 - core index']
  #allocation1 [shape = 'u32[144,128]{1,0:T(1,128)}', space=vmem, size = 0x12000, scoped, tag = 'internal scratch']
  %s0 = inlined_call_operand.vmem [shape: f32[32,8], index: 0, kind: input, shape index: {}]
  %s1 = inlined_call_operand.vmem [shape: f32[32,1], index: 1, kind: input, shape index: {}]
  %s2 = inlined_call_operand.vmem [shape: f32[32,1], index: 2, kind: input, shape index: {}]
  %s3 = inlined_call_operand.vmem [shape: bf16[16,128], index: 3, kind: input, shape index: {}]
  %s4 = inlined_call_operand.vmem [shape: f32[1,128], index: 4, kind: input, shape index: {}]
  %s5 = inlined_call_operand.vmem [shape: bf16[256,128], index: 5, kind: input, shape index: {}]
  %s6 = inlined_call_operand.vmem [shape: f32[1,128], index: 6, kind: input, shape index: {}]
  %s7 = inlined_call_operand.vmem [shape: bf16[128,128], index: 7, kind: input, shape index: {}]
  %s8 = inlined_call_operand.vmem [shape: f32[1,128], index: 8, kind: input, shape index: {}]
  %s9 = inlined_call_operand.vmem [shape: bf16[128,128], index: 9, kind: input, shape index: {}]
  %s10 = inlined_call_operand.vmem [shape: f32[1,128], index: 10, kind: input, shape index: {}]
  %s11 = inlined_call_operand.vmem [shape: bf16[128,128], index: 11, kind: input, shape index: {}]
  %s12 = inlined_call_operand.vmem [shape: f32[1,128], index: 12, kind: input, shape index: {}]
  %s13 = inlined_call_operand.vmem [shape: f32[32,128], index: 13, kind: output, shape index: {}]
  %s14 = sld [smem:[#allocation0]]
  $region62: #{keypoint_pipeline.1} parent=0
    _
  %s16 = ssub.s32 1, %s14
  %s17 = scalar_select 0, %s16, %s14
  // Predicated region
  $region2: #{keypoint_pipeline.1} parent=0 // pred_check
    _
  $region3: #{keypoint_pipeline.1} parent=0 // pred_check_branch
    %19 = sbr.rel (0) target = $region5
  $region4: #{keypoint_pipeline.1} parent=0 // pred_region
    _
  $region5: #{keypoint_pipeline.1} parent=0 // pred_fallthru
    _
  // Predicated region
  $region6: #{keypoint_pipeline.1} parent=0 // pred_check
    _
  $region7: #{keypoint_pipeline.1} parent=0 // pred_check_branch
    %21 = sbr.rel (0) target = $region9
  $region8: #{keypoint_pipeline.1} parent=0 // pred_region
    _
  $region9: #{keypoint_pipeline.1} parent=0 // pred_fallthru
    _
  // Predicated region
  $region10: #{keypoint_pipeline.1} parent=0 // pred_check
    _
  $region11: #{keypoint_pipeline.1} parent=0 // pred_check_branch
    %23 = sbr.rel (0) target = $region13
  $region12: #{keypoint_pipeline.1} parent=0 // pred_region
    _
  $region13: #{keypoint_pipeline.1} parent=0 // pred_fallthru
    _
  // Predicated region
  $region14: #{keypoint_pipeline.1} parent=0 // pred_check
    _
  $region15: #{keypoint_pipeline.1} parent=0 // pred_check_branch
    %25 = sbr.rel (0) target = $region17
  $region16: #{keypoint_pipeline.1} parent=0 // pred_region
    _
  $region17: #{keypoint_pipeline.1} parent=0 // pred_fallthru
    _
  // Predicated region
  $region18: #{keypoint_pipeline.1} parent=0 // pred_check
    _
  $region19: #{keypoint_pipeline.1} parent=0 // pred_check_branch
    %27 = sbr.rel (0) target = $region21
  $region20: #{keypoint_pipeline.1} parent=0 // pred_region
    _
  $region21: #{keypoint_pipeline.1} parent=0 // pred_fallthru
    _
  // Predicated region
  $region22: #{keypoint_pipeline.1} parent=0 // pred_check
    _
  $region23: #{keypoint_pipeline.1} parent=0 // pred_check_branch
    %29 = sbr.rel (0) target = $region25
  $region24: #{keypoint_pipeline.1} parent=0 // pred_region
    _
  $region25: #{keypoint_pipeline.1} parent=0 // pred_fallthru
    _
  // Predicated region
  $region26: #{keypoint_pipeline.1} parent=0 // pred_check
    _
  $region27: #{keypoint_pipeline.1} parent=0 // pred_check_branch
    %31 = sbr.rel (0) target = $region29
  $region28: #{keypoint_pipeline.1} parent=0 // pred_region
    _
  $region29: #{keypoint_pipeline.1} parent=0 // pred_fallthru
    _
  // Predicated region
  $region30: #{keypoint_pipeline.1} parent=0 // pred_check
    _
  $region31: #{keypoint_pipeline.1} parent=0 // pred_check_branch
    %33 = sbr.rel (0) target = $region33
  $region32: #{keypoint_pipeline.1} parent=0 // pred_region
    _
  $region33: #{keypoint_pipeline.1} parent=0 // pred_fallthru
    _
  // Predicated region
  $region34: #{keypoint_pipeline.1} parent=0 // pred_check
    _
  $region35: #{keypoint_pipeline.1} parent=0 // pred_check_branch
    %35 = sbr.rel (0) target = $region37
  $region36: #{keypoint_pipeline.1} parent=0 // pred_region
    _
  $region37: #{keypoint_pipeline.1} parent=0 // pred_fallthru
    _
  // Predicated region
  $region38: #{keypoint_pipeline.1} parent=0 // pred_check
    _
  $region39: #{keypoint_pipeline.1} parent=0 // pred_check_branch
    %37 = sbr.rel (0) target = $region41
  $region40: #{keypoint_pipeline.1} parent=0 // pred_region
    _
  $region41: #{keypoint_pipeline.1} parent=0 // pred_fallthru
    _
  // Predicated region
  $region42: #{keypoint_pipeline.1} parent=0 // pred_check
    _
  $region43: #{keypoint_pipeline.1} parent=0 // pred_check_branch
    %39 = sbr.rel (0) target = $region45
  $region44: #{keypoint_pipeline.1} parent=0 // pred_region
    _
  $region45: #{keypoint_pipeline.1} parent=0 // pred_fallthru
    _
  // Predicated region
  $region46: #{keypoint_pipeline.1} parent=0 // pred_check
    _
  $region47: #{keypoint_pipeline.1} parent=0 // pred_check_branch
    %41 = sbr.rel (0) target = $region49
  $region48: #{keypoint_pipeline.1} parent=0 // pred_region
    _
  $region49: #{keypoint_pipeline.1} parent=0 // pred_fallthru
    _
  // Predicated region
  $region50: #{keypoint_pipeline.1} parent=0 // pred_check
    _
  $region51: #{keypoint_pipeline.1} parent=0 // pred_check_branch
    %43 = sbr.rel (0) target = $region53
  $region52: #{keypoint_pipeline.1} parent=0 // pred_region
    _
  $region53: #{keypoint_pipeline.1} parent=0 // pred_fallthru
    _
  %v45 = vld [vmem:[%s0] sm:$0xff]
  %v46 = vld [vmem:[%s0 + $0x8] sm:$0xff]
  %v47 = vld [vmem:[%s0 + $0x10] sm:$0xff]
  %v48 = vld [vmem:[%s0 + $0x18] sm:$0xff]
  %v49 = vld [vmem:[%s1] sm:$0xff]
  %v50 = vld [vmem:[%s1 + $0x8] sm:$0xff]
  %v51 = vld [vmem:[%s1 + $0x10] sm:$0xff]
  %v52 = vld [vmem:[%s1 + $0x18] sm:$0xff]
  %v53 = vld [vmem:[%s2] sm:$0xff]
  %v54 = vld [vmem:[%s2 + $0x8] sm:$0xff]
  %v55 = vld [vmem:[%s2 + $0x10] sm:$0xff]
  %v56 = vld [vmem:[%s2 + $0x18] sm:$0xff]
  %v57 = vsub.f32 1.0, %v49
  %v58 = vsub.f32 1.0, %v50
  %v59 = vsub.f32 1.0, %v51
  %v60 = vsub.f32 1.0, %v52
  %v61 = vsub.f32 1.0, %v53
  %v62 = vsub.f32 1.0, %v54
  %v63 = vsub.f32 1.0, %v55
  %v64 = vsub.f32 1.0, %v56
  %66 = vset.pattern.permute.xlu0 0
  %67 = vperm.xlu0 %66, %v53
  %v68 = vpop.permute.xlu0 %67
  %71 = vset.pattern.permute.xlu0 0
  %72 = vperm.xlu0 %71, %v54
  %v73 = vpop.permute.xlu0 %72
  %76 = vset.pattern.permute.xlu0 0
  %77 = vperm.xlu0 %76, %v55
  %v78 = vpop.permute.xlu0 %77
  %81 = vset.pattern.permute.xlu0 0
  %82 = vperm.xlu0 %81, %v56
  %v83 = vpop.permute.xlu0 %82
  %v85 = vmul.f32 %v68, %v48
  %v86 = vmul.f32 %v73, %v45
  %v87 = vmul.f32 %v78, %v46
  %v88 = vmul.f32 %v83, %v47
  %vm93 = vcmask 1046528
  %v94 = vrot.slane %v45, 1
  %v95 = vrot.slane %v46, 1
  %v96 = vsel %vm93, %v94, %v95
  %v97 = vrot.slane %v47, 1
  %v98 = vsel %vm93, %v95, %v97
  %v99 = vrot.slane %v48, 1
  %v100 = vsel %vm93, %v97, %v99
  %v106 = vsel %vm93, %v99, %v94
  %108 = vset.pattern.permute.xlu0 0
  %109 = vperm.xlu0 %108, %v61
  %v110 = vpop.permute.xlu0 %109
  %113 = vset.pattern.permute.xlu0 0
  %114 = vperm.xlu0 %113, %v62
  %v115 = vpop.permute.xlu0 %114
  %118 = vset.pattern.permute.xlu0 0
  %119 = vperm.xlu0 %118, %v63
  %v120 = vpop.permute.xlu0 %119
  %123 = vset.pattern.permute.xlu0 0
  %124 = vperm.xlu0 %123, %v64
  %v125 = vpop.permute.xlu0 %124
  %v127 = vmul.f32 %v110, %v96
  %v128 = vmul.f32 %v115, %v98
  %v129 = vmul.f32 %v120, %v100
  %v130 = vmul.f32 %v125, %v106
  %v131 = vadd.f32 %v85, %v127
  %v132 = vadd.f32 %v86, %v128
  %v133 = vadd.f32 %v87, %v129
  %v134 = vadd.f32 %v88, %v130
  %136 = vset.pattern.permute.xlu0 0
  %137 = vperm.xlu0 %136, %v49
  %v138 = vpop.permute.xlu0 %137
  %141 = vset.pattern.permute.xlu0 0
  %142 = vperm.xlu0 %141, %v50
  %v143 = vpop.permute.xlu0 %142
  %146 = vset.pattern.permute.xlu0 0
  %147 = vperm.xlu0 %146, %v51
  %v148 = vpop.permute.xlu0 %147
  %151 = vset.pattern.permute.xlu0 0
  %152 = vperm.xlu0 %151, %v52
  %v153 = vpop.permute.xlu0 %152
  %v155 = vmul.f32 %v138, %v46
  %v156 = vmul.f32 %v143, %v47
  %v157 = vmul.f32 %v148, %v48
  %v158 = vmul.f32 %v153, %v45
  %v159 = vrot.slane %v48, 7
  %vm161 = vcmask 1040384
  %v162 = vrot.slane %v45, 7
  %v163 = vrot.slane %v46, 7
  %v164 = vsel %vm161, %v162, %v163
  %v165 = vrot.slane %v47, 7
  %v166 = vsel %vm161, %v163, %v165
  %v167 = vsel %vm161, %v165, %v159
  %v172 = vsel %vm161, %v159, %v162
  %174 = vset.pattern.permute.xlu0 0
  %175 = vperm.xlu0 %174, %v57
  %v176 = vpop.permute.xlu0 %175
  %179 = vset.pattern.permute.xlu0 0
  %180 = vperm.xlu0 %179, %v58
  %v181 = vpop.permute.xlu0 %180
  %184 = vset.pattern.permute.xlu0 0
  %185 = vperm.xlu0 %184, %v59
  %v186 = vpop.permute.xlu0 %185
  %189 = vset.pattern.permute.xlu0 0
  %190 = vperm.xlu0 %189, %v60
  %v191 = vpop.permute.xlu0 %190
  %v193 = vmul.f32 %v176, %v172
  %v194 = vmul.f32 %v181, %v164
  %v195 = vmul.f32 %v186, %v166
  %v196 = vmul.f32 %v191, %v167
  %v197 = vadd.f32 %v155, %v193
  %v198 = vadd.f32 %v156, %v194
  %v199 = vadd.f32 %v157, %v195
  %v200 = vadd.f32 %v158, %v196
  %v201 = vadd.f32 %v131, %v197
  %v202 = vadd.f32 %v132, %v198
  %v203 = vadd.f32 %v133, %v199
  %v204 = vadd.f32 %v134, %v200
  %v205 = vmul.f32 %v201, 0.5
  %v206 = vmul.f32 %v202, 0.5
  %v207 = vmul.f32 %v203, 0.5
  %v208 = vmul.f32 %v204, 0.5
  %209 = vrot.lane.b32.xlu0 %v45, 8
  %v210 = vpop.permute.xlu0 %209
  %211 = vrot.lane.b32.xlu0 %v46, 8
  %v212 = vpop.permute.xlu0 %211
  %213 = vrot.lane.b32.xlu0 %v47, 8
  %v214 = vpop.permute.xlu0 %213
  %215 = vrot.lane.b32.xlu0 %v48, 8
  %v216 = vpop.permute.xlu0 %215
  %vm221 = vcmask 64512
  %v222 = vsel %vm221, %v205, %v210
  %v223 = vsel %vm221, %v206, %v212
  %v224 = vsel %vm221, %v207, %v214
  %v225 = vsel %vm221, %v208, %v216
  %v226 = vpack.c.bf16 %v223, %v222
  %v227 = vpack.c.bf16 %v225, %v224
  %v228 = vld [vmem:[%s3] sm:$0xf]
  %v229 = vld [vmem:[%s3 + $0x4] sm:$0xf]
  %v230 = vld [vmem:[%s4] sm:$0x1]
  %v232 = vlaneseq
  %v233 = vshrl.u32 %v232, 7
  %v234 = vsub.s32 0, %v233
  %v235 = vrot.slane %v230, %v234
  %v239 = vunpack.c.l.b16 %v228
  %v240 = vunpack.c.l.b16 %v229
  %v241 = vpack.c.b16 %v240, %v239
  %vm243 = vcmask 130048
  %v245 = vsel %vm243, %v226, 0
  %v248 = vsel %vm243, %v227, 0
  %250 = vmatprep.subr.bf16.mxu0 0
  %251 = vmatpush1.bf16.msra.mxu0 0
  %252 = vmatprep.subr.bf16.mxu0 0
  %253 = vmatpush1.bf16.msra.mxu0 0
  %254 = vmatprep.subr.bf16.mxu0 0
  %255 = vmatpush1.bf16.msra.mxu0 0
  %256 = vmatprep.subr.bf16.mxu0 0
  %257 = vmatpush1.bf16.msra.mxu0 0
  %258 = vmatprep.subr.bf16.mxu0 0
  %259 = vmatpush1.bf16.msra.mxu0 0
  %260 = vmatprep.subr.bf16.mxu0 0
  %261 = vmatpush1.bf16.msra.mxu0 0
  %262 = vmatprep.subr.bf16.mxu0 0
  %263 = vmatpush1.bf16.msra.mxu0 0
  %264 = vmatprep.subr.bf16.mxu0 0
  %265 = vmatpush1.bf16.msra.mxu0 %v241
  %266 = vmatprep.subr.bf16.mxu0 0
  %267 = vmatpush2.bf16.msra.mxu0 0
  %268 = vmatprep.subr.bf16.mxu0 0
  %269 = vmatpush2.bf16.msra.mxu0 0
  %270 = vmatprep.subr.bf16.mxu0 0
  %271 = vmatpush2.bf16.msra.mxu0 0
  %272 = vmatprep.subr.bf16.mxu0 0
  %273 = vmatpush2.bf16.msra.mxu0 0
  %274 = vmatprep.subr.bf16.mxu0 0
  %275 = vmatpush2.bf16.msra.mxu0 0
  %276 = vmatprep.subr.bf16.mxu0 0
  %277 = vmatpush2.bf16.msra.mxu0 0
  %278 = vmatprep.subr.bf16.mxu0 0
  %279 = vmatpush2.bf16.msra.mxu0 0
  %280 = vmatprep.subr.bf16.mxu0 0
  %281 = vmatpush2.bf16.msra.mxu0 0
  %282 = vmatprep.mubr.bf16.mxu0 0
  %283 = vmatmul.mubr.bf16.gmra.mxu0 %v245
  %v284 = vpop.f32.mrf.mxu0
  %v285 = vadd.f32 %v235, %v284
  %v286 = vpop.f32.mrf.mxu0
  %v287 = vpop.f32.mrf.mxu0
  %v288 = vadd.f32 %v235, %v287
  %v289 = vpop.f32.mrf.mxu0
  %290 = vmatprep.mubr.bf16.mxu0 0
  %291 = vmatmul.mubr.bf16.gmra.mxu0 %v248
  %v292 = vpop.f32.mrf.mxu0
  %v293 = vadd.f32 %v235, %v292
  %v294 = vpop.f32.mrf.mxu0
  %v295 = vpop.f32.mrf.mxu0
  %v296 = vadd.f32 %v235, %v295
  %v297 = vpop.f32.mrf.mxu0
  %298 = vdwg.mxu0
  %v299 = vmax.f32 %v285, 0.0
  %v300 = vmax.f32 %v288, 0.0
  %v301 = vmax.f32 %v293, 0.0
  %v302 = vmax.f32 %v296, 0.0
  %v303 = vmul.f32 %v68, %v302
  %v304 = vmul.f32 %v73, %v299
  %v305 = vmul.f32 %v78, %v300
  %v306 = vmul.f32 %v83, %v301
  %v311 = vrot.slane %v299, 1
  %v312 = vrot.slane %v300, 1
  %v313 = vsel %vm93, %v311, %v312
  %v314 = vrot.slane %v301, 1
  %v315 = vsel %vm93, %v312, %v314
  %v316 = vrot.slane %v302, 1
  %v317 = vsel %vm93, %v314, %v316
  %v323 = vsel %vm93, %v316, %v311
  %v324 = vmul.f32 %v110, %v313
  %v325 = vmul.f32 %v115, %v315
  %v326 = vmul.f32 %v120, %v317
  %v327 = vmul.f32 %v125, %v323
  %v328 = vadd.f32 %v303, %v324
  %v329 = vadd.f32 %v304, %v325
  %v330 = vadd.f32 %v305, %v326
  %v331 = vadd.f32 %v306, %v327
  %v332 = vmul.f32 %v138, %v300
  %v333 = vmul.f32 %v143, %v301
  %v334 = vmul.f32 %v148, %v302
  %v335 = vmul.f32 %v153, %v299
  %v336 = vrot.slane %v302, 7
  %v338 = vrot.slane %v299, 7
  %v339 = vrot.slane %v300, 7
  %v340 = vsel %vm161, %v338, %v339
  %v341 = vrot.slane %v301, 7
  %v342 = vsel %vm161, %v339, %v341
  %v343 = vsel %vm161, %v341, %v336
  %v348 = vsel %vm161, %v336, %v338
  %v349 = vmul.f32 %v176, %v348
  %v350 = vmul.f32 %v181, %v340
  %v351 = vmul.f32 %v186, %v342
  %v352 = vmul.f32 %v191, %v343
  %v353 = vadd.f32 %v332, %v349
  %v354 = vadd.f32 %v333, %v350
  %v355 = vadd.f32 %v334, %v351
  %v356 = vadd.f32 %v335, %v352
  %v357 = vadd.f32 %v328, %v353
  %v358 = vadd.f32 %v329, %v354
  %v359 = vadd.f32 %v330, %v355
  %v360 = vadd.f32 %v331, %v356
  %v361 = vmul.f32 %v357, 0.5
  %v362 = vmul.f32 %v358, 0.5
  %v363 = vmul.f32 %v359, 0.5
  %v364 = vmul.f32 %v360, 0.5
  %v365 = vpack.c.bf16 %v362, %v361
  %v366 = vpack.c.bf16 %v300, %v299
  %v367 = vpack.c.bf16 %v364, %v363
  %v368 = vpack.c.bf16 %v302, %v301
  %v369 = vld [vmem:[%s5] sm:$0xf]
  %v370 = vld [vmem:[%s5 + $0x4] sm:$0xf]
  %v371 = vld [vmem:[%s5 + $0x8] sm:$0xf]
  %v372 = vld [vmem:[%s5 + $0xc] sm:$0xf]
  %v373 = vld [vmem:[%s5 + $0x10] sm:$0xf]
  %v374 = vld [vmem:[%s5 + $0x14] sm:$0xf]
  %v375 = vld [vmem:[%s5 + $0x18] sm:$0xf]
  %v376 = vld [vmem:[%s5 + $0x1c] sm:$0xf]
  %v377 = vld [vmem:[%s5 + $0x20] sm:$0xf]
  %v378 = vld [vmem:[%s5 + $0x24] sm:$0xf]
  %v379 = vld [vmem:[%s5 + $0x28] sm:$0xf]
  %v380 = vld [vmem:[%s5 + $0x2c] sm:$0xf]
  %v381 = vld [vmem:[%s5 + $0x30] sm:$0xf]
  %v382 = vld [vmem:[%s5 + $0x34] sm:$0xf]
  %v383 = vld [vmem:[%s5 + $0x38] sm:$0xf]
  %v384 = vld [vmem:[%s5 + $0x3c] sm:$0xf]
  %v385 = vld [vmem:[%s5 + $0x40] sm:$0xf]
  %v386 = vld [vmem:[%s5 + $0x44] sm:$0xf]
  %v387 = vld [vmem:[%s5 + $0x48] sm:$0xf]
  %v388 = vld [vmem:[%s5 + $0x4c] sm:$0xf]
  %v389 = vld [vmem:[%s5 + $0x50] sm:$0xf]
  %v390 = vld [vmem:[%s5 + $0x54] sm:$0xf]
  %v391 = vld [vmem:[%s5 + $0x58] sm:$0xf]
  %v392 = vld [vmem:[%s5 + $0x5c] sm:$0xf]
  %v393 = vld [vmem:[%s5 + $0x60] sm:$0xf]
  %v394 = vld [vmem:[%s5 + $0x64] sm:$0xf]
  %v395 = vld [vmem:[%s5 + $0x68] sm:$0xf]
  %v396 = vld [vmem:[%s5 + $0x6c] sm:$0xf]
  %v397 = vld [vmem:[%s5 + $0x70] sm:$0xf]
  %v398 = vld [vmem:[%s5 + $0x74] sm:$0xf]
  %v399 = vld [vmem:[%s5 + $0x78] sm:$0xf]
  %v400 = vld [vmem:[%s5 + $0x7c] sm:$0xf]
  %v401 = vld [vmem:[%s6] sm:$0x1]
  %v403 = vlaneseq
  %v404 = vshrl.u32 %v403, 7
  %v405 = vsub.s32 0, %v404
  %v406 = vrot.slane %v401, %v405
  %v440 = vunpack.c.l.b16 %v369
  %v441 = vunpack.c.l.b16 %v370
  %v442 = vunpack.c.l.b16 %v371
  %v443 = vunpack.c.l.b16 %v372
  %v444 = vunpack.c.l.b16 %v373
  %v445 = vunpack.c.l.b16 %v374
  %v446 = vunpack.c.l.b16 %v375
  %v447 = vunpack.c.l.b16 %v376
  %v448 = vunpack.c.l.b16 %v377
  %v449 = vunpack.c.l.b16 %v378
  %v450 = vunpack.c.l.b16 %v379
  %v451 = vunpack.c.l.b16 %v380
  %v452 = vunpack.c.l.b16 %v381
  %v453 = vunpack.c.l.b16 %v382
  %v454 = vunpack.c.l.b16 %v383
  %v455 = vunpack.c.l.b16 %v384
  %v456 = vunpack.c.l.b16 %v385
  %v457 = vunpack.c.l.b16 %v386
  %v458 = vunpack.c.l.b16 %v387
  %v459 = vunpack.c.l.b16 %v388
  %v460 = vunpack.c.l.b16 %v389
  %v461 = vunpack.c.l.b16 %v390
  %v462 = vunpack.c.l.b16 %v391
  %v463 = vunpack.c.l.b16 %v392
  %v464 = vunpack.c.l.b16 %v393
  %v465 = vunpack.c.l.b16 %v394
  %v466 = vunpack.c.l.b16 %v395
  %v467 = vunpack.c.l.b16 %v396
  %v468 = vunpack.c.l.b16 %v397
  %v469 = vunpack.c.l.b16 %v398
  %v470 = vunpack.c.l.b16 %v399
  %v471 = vunpack.c.l.b16 %v400
  %v472 = vpack.c.b16 %v441, %v440
  %v473 = vpack.c.b16 %v443, %v442
  %v474 = vpack.c.b16 %v445, %v444
  %v475 = vpack.c.b16 %v447, %v446
  %v476 = vpack.c.b16 %v449, %v448
  %v477 = vpack.c.b16 %v451, %v450
  %v478 = vpack.c.b16 %v453, %v452
  %v479 = vpack.c.b16 %v455, %v454
  %v480 = vpack.c.b16 %v457, %v456
  %v481 = vpack.c.b16 %v459, %v458
  %v482 = vpack.c.b16 %v461, %v460
  %v483 = vpack.c.b16 %v463, %v462
  %v484 = vpack.c.b16 %v465, %v464
  %v485 = vpack.c.b16 %v467, %v466
  %v486 = vpack.c.b16 %v469, %v468
  %v487 = vpack.c.b16 %v471, %v470
  %504 = vmatprep.subr.bf16.mxu0 0
  %505 = vmatpush1.bf16.msra.mxu0 %v479
  %506 = vmatprep.subr.bf16.mxu0 0
  %507 = vmatpush1.bf16.msra.mxu0 %v478
  %508 = vmatprep.subr.bf16.mxu0 0
  %509 = vmatpush1.bf16.msra.mxu0 %v477
  %510 = vmatprep.subr.bf16.mxu0 0
  %511 = vmatpush1.bf16.msra.mxu0 %v476
  %512 = vmatprep.subr.bf16.mxu0 0
  %513 = vmatpush1.bf16.msra.mxu0 %v475
  %514 = vmatprep.subr.bf16.mxu0 0
  %515 = vmatpush1.bf16.msra.mxu0 %v474
  %516 = vmatprep.subr.bf16.mxu0 0
  %517 = vmatpush1.bf16.msra.mxu0 %v473
  %518 = vmatprep.subr.bf16.mxu0 0
  %519 = vmatpush1.bf16.msra.mxu0 %v472
  %520 = vmatprep.subr.bf16.mxu0 0
  %521 = vmatpush2.bf16.msra.mxu0 %v487
  %522 = vmatprep.subr.bf16.mxu0 0
  %523 = vmatpush2.bf16.msra.mxu0 %v486
  %524 = vmatprep.subr.bf16.mxu0 0
  %525 = vmatpush2.bf16.msra.mxu0 %v485
  %526 = vmatprep.subr.bf16.mxu0 0
  %527 = vmatpush2.bf16.msra.mxu0 %v484
  %528 = vmatprep.subr.bf16.mxu0 0
  %529 = vmatpush2.bf16.msra.mxu0 %v483
  %530 = vmatprep.subr.bf16.mxu0 0
  %531 = vmatpush2.bf16.msra.mxu0 %v482
  %532 = vmatprep.subr.bf16.mxu0 0
  %533 = vmatpush2.bf16.msra.mxu0 %v481
  %534 = vmatprep.subr.bf16.mxu0 0
  %535 = vmatpush2.bf16.msra.mxu0 %v480
  %536 = vmatprep.mubr.bf16.mxu0 %v366
  %537 = vmatmul.mubr.bf16.gmra.mxu0 %v365
  %v538 = vpop.f32.mrf.mxu0
  %v539 = vadd.f32 %v406, %v538
  %v540 = vpop.f32.mrf.mxu0
  %v541 = vpop.f32.mrf.mxu0
  %v542 = vadd.f32 %v406, %v541
  %v543 = vpop.f32.mrf.mxu0
  %544 = vmatprep.mubr.bf16.mxu0 %v368
  %545 = vmatmul.mubr.bf16.gmra.mxu0 %v367
  %v546 = vpop.f32.mrf.mxu0
  %v547 = vadd.f32 %v406, %v546
  %v548 = vpop.f32.mrf.mxu0
  %v549 = vpop.f32.mrf.mxu0
  %v550 = vadd.f32 %v406, %v549
  %v551 = vpop.f32.mrf.mxu0
  %552 = vdwg.mxu0
  %v553 = vmax.f32 %v539, 0.0
  %v554 = vmax.f32 %v542, 0.0
  %v555 = vmax.f32 %v547, 0.0
  %v556 = vmax.f32 %v550, 0.0
  %v557 = vmul.f32 %v68, %v556
  %v558 = vmul.f32 %v73, %v553
  %v559 = vmul.f32 %v78, %v554
  %v560 = vmul.f32 %v83, %v555
  %v565 = vrot.slane %v553, 1
  %v566 = vrot.slane %v554, 1
  %v567 = vsel %vm93, %v565, %v566
  %v568 = vrot.slane %v555, 1
  %v569 = vsel %vm93, %v566, %v568
  %v570 = vrot.slane %v556, 1
  %v571 = vsel %vm93, %v568, %v570
  %v577 = vsel %vm93, %v570, %v565
  %v578 = vmul.f32 %v110, %v567
  %v579 = vmul.f32 %v115, %v569
  %v580 = vmul.f32 %v120, %v571
  %v581 = vmul.f32 %v125, %v577
  %v582 = vadd.f32 %v557, %v578
  %v583 = vadd.f32 %v558, %v579
  %v584 = vadd.f32 %v559, %v580
  %v585 = vadd.f32 %v560, %v581
  %v586 = vmul.f32 %v138, %v554
  %v587 = vmul.f32 %v143, %v555
  %v588 = vmul.f32 %v148, %v556
  %v589 = vmul.f32 %v153, %v553
  %v590 = vrot.slane %v556, 7
  %v592 = vrot.slane %v553, 7
  %v593 = vrot.slane %v554, 7
  %v594 = vsel %vm161, %v592, %v593
  %v595 = vrot.slane %v555, 7
  %v596 = vsel %vm161, %v593, %v595
  %v597 = vsel %vm161, %v595, %v590
  %v602 = vsel %vm161, %v590, %v592
  %v603 = vmul.f32 %v176, %v602
  %v604 = vmul.f32 %v181, %v594
  %v605 = vmul.f32 %v186, %v596
  %v606 = vmul.f32 %v191, %v597
  %v607 = vadd.f32 %v586, %v603
  %v608 = vadd.f32 %v587, %v604
  %v609 = vadd.f32 %v588, %v605
  %v610 = vadd.f32 %v589, %v606
  %v611 = vadd.f32 %v553, %v582
  %v612 = vadd.f32 %v554, %v583
  %v613 = vadd.f32 %v555, %v584
  %v614 = vadd.f32 %v556, %v585
  %v615 = vadd.f32 %v611, %v607
  %v616 = vadd.f32 %v612, %v608
  %v617 = vadd.f32 %v613, %v609
  %v618 = vadd.f32 %v614, %v610
  %v619 = vmul.f32 %v615, 0.33333334
  %v620 = vmul.f32 %v616, 0.33333334
  %v621 = vmul.f32 %v617, 0.33333334
  %v622 = vmul.f32 %v618, 0.33333334
  %v623 = vpack.c.bf16 %v620, %v619
  %v624 = vpack.c.bf16 %v622, %v621
  %v625 = vld [vmem:[%s7] sm:$0xf]
  %v626 = vld [vmem:[%s7 + $0x4] sm:$0xf]
  %v627 = vld [vmem:[%s7 + $0x8] sm:$0xf]
  %v628 = vld [vmem:[%s7 + $0xc] sm:$0xf]
  %v629 = vld [vmem:[%s7 + $0x10] sm:$0xf]
  %v630 = vld [vmem:[%s7 + $0x14] sm:$0xf]
  %v631 = vld [vmem:[%s7 + $0x18] sm:$0xf]
  %v632 = vld [vmem:[%s7 + $0x1c] sm:$0xf]
  %v633 = vld [vmem:[%s7 + $0x20] sm:$0xf]
  %v634 = vld [vmem:[%s7 + $0x24] sm:$0xf]
  %v635 = vld [vmem:[%s7 + $0x28] sm:$0xf]
  %v636 = vld [vmem:[%s7 + $0x2c] sm:$0xf]
  %v637 = vld [vmem:[%s7 + $0x30] sm:$0xf]
  %v638 = vld [vmem:[%s7 + $0x34] sm:$0xf]
  %v639 = vld [vmem:[%s7 + $0x38] sm:$0xf]
  %v640 = vld [vmem:[%s7 + $0x3c] sm:$0xf]
  %v641 = vld [vmem:[%s8] sm:$0x1]
  %v643 = vlaneseq
  %v644 = vshrl.u32 %v643, 7
  %v645 = vsub.s32 0, %v644
  %v646 = vrot.slane %v641, %v645
  %v664 = vunpack.c.l.b16 %v625
  %v665 = vunpack.c.l.b16 %v626
  %v666 = vunpack.c.l.b16 %v627
  %v667 = vunpack.c.l.b16 %v628
  %v668 = vunpack.c.l.b16 %v629
  %v669 = vunpack.c.l.b16 %v630
  %v670 = vunpack.c.l.b16 %v631
  %v671 = vunpack.c.l.b16 %v632
  %v672 = vunpack.c.l.b16 %v633
  %v673 = vunpack.c.l.b16 %v634
  %v674 = vunpack.c.l.b16 %v635
  %v675 = vunpack.c.l.b16 %v636
  %v676 = vunpack.c.l.b16 %v637
  %v677 = vunpack.c.l.b16 %v638
  %v678 = vunpack.c.l.b16 %v639
  %v679 = vunpack.c.l.b16 %v640
  %v680 = vpack.c.b16 %v665, %v664
  %v681 = vpack.c.b16 %v667, %v666
  %v682 = vpack.c.b16 %v669, %v668
  %v683 = vpack.c.b16 %v671, %v670
  %v684 = vpack.c.b16 %v673, %v672
  %v685 = vpack.c.b16 %v675, %v674
  %v686 = vpack.c.b16 %v677, %v676
  %v687 = vpack.c.b16 %v679, %v678
  %696 = vmatprep.subr.bf16.mxu0 0
  %697 = vmatpush1.bf16.msra.mxu0 %v687
  %698 = vmatprep.subr.bf16.mxu0 0
  %699 = vmatpush1.bf16.msra.mxu0 %v686
  %700 = vmatprep.subr.bf16.mxu0 0
  %701 = vmatpush1.bf16.msra.mxu0 %v685
  %702 = vmatprep.subr.bf16.mxu0 0
  %703 = vmatpush1.bf16.msra.mxu0 %v684
  %704 = vmatprep.subr.bf16.mxu0 0
  %705 = vmatpush1.bf16.msra.mxu0 %v683
  %706 = vmatprep.subr.bf16.mxu0 0
  %707 = vmatpush1.bf16.msra.mxu0 %v682
  %708 = vmatprep.subr.bf16.mxu0 0
  %709 = vmatpush1.bf16.msra.mxu0 %v681
  %710 = vmatprep.subr.bf16.mxu0 0
  %711 = vmatpush1.bf16.msra.mxu0 %v680
  %712 = vmatprep.subr.bf16.mxu0 0
  %713 = vmatpush2.bf16.msra.mxu0 0
  %714 = vmatprep.subr.bf16.mxu0 0
  %715 = vmatpush2.bf16.msra.mxu0 0
  %716 = vmatprep.subr.bf16.mxu0 0
  %717 = vmatpush2.bf16.msra.mxu0 0
  %718 = vmatprep.subr.bf16.mxu0 0
  %719 = vmatpush2.bf16.msra.mxu0 0
  %720 = vmatprep.subr.bf16.mxu0 0
  %721 = vmatpush2.bf16.msra.mxu0 0
  %722 = vmatprep.subr.bf16.mxu0 0
  %723 = vmatpush2.bf16.msra.mxu0 0
  %724 = vmatprep.subr.bf16.mxu0 0
  %725 = vmatpush2.bf16.msra.mxu0 0
  %726 = vmatprep.subr.bf16.mxu0 0
  %727 = vmatpush2.bf16.msra.mxu0 0
  %728 = vmatprep.mubr.bf16.mxu0 0
  %729 = vmatmul.mubr.bf16.gmra.mxu0 %v623
  %v730 = vpop.f32.mrf.mxu0
  %v731 = vadd.f32 %v646, %v730
  %v732 = vpop.f32.mrf.mxu0
  %v733 = vpop.f32.mrf.mxu0
  %v734 = vadd.f32 %v646, %v733
  %v735 = vpop.f32.mrf.mxu0
  %736 = vmatprep.mubr.bf16.mxu0 0
  %737 = vmatmul.mubr.bf16.gmra.mxu0 %v624
  %v738 = vpop.f32.mrf.mxu0
  %v739 = vadd.f32 %v646, %v738
  %v740 = vpop.f32.mrf.mxu0
  %v741 = vpop.f32.mrf.mxu0
  %v742 = vadd.f32 %v646, %v741
  %v743 = vpop.f32.mrf.mxu0
  %744 = vdwg.mxu0
  %v745 = vmax.f32 %v731, 0.0
  %v746 = vmax.f32 %v734, 0.0
  %v747 = vmax.f32 %v739, 0.0
  %v748 = vmax.f32 %v742, 0.0
  %v749 = vmul.f32 %v68, %v748
  %v750 = vmul.f32 %v73, %v745
  %v751 = vmul.f32 %v78, %v746
  %v752 = vmul.f32 %v83, %v747
  %v757 = vrot.slane %v745, 1
  %v758 = vrot.slane %v746, 1
  %v759 = vsel %vm93, %v757, %v758
  %v760 = vrot.slane %v747, 1
  %v761 = vsel %vm93, %v758, %v760
  %v762 = vrot.slane %v748, 1
  %v763 = vsel %vm93, %v760, %v762
  %v769 = vsel %vm93, %v762, %v757
  %v770 = vmul.f32 %v110, %v759
  %v771 = vmul.f32 %v115, %v761
  %v772 = vmul.f32 %v120, %v763
  %v773 = vmul.f32 %v125, %v769
  %v774 = vadd.f32 %v749, %v770
  %v775 = vadd.f32 %v750, %v771
  %v776 = vadd.f32 %v751, %v772
  %v777 = vadd.f32 %v752, %v773
  %v778 = vmul.f32 %v138, %v746
  %v779 = vmul.f32 %v143, %v747
  %v780 = vmul.f32 %v148, %v748
  %v781 = vmul.f32 %v153, %v745
  %v782 = vrot.slane %v748, 7
  %v784 = vrot.slane %v745, 7
  %v785 = vrot.slane %v746, 7
  %v786 = vsel %vm161, %v784, %v785
  %v787 = vrot.slane %v747, 7
  %v788 = vsel %vm161, %v785, %v787
  %v789 = vsel %vm161, %v787, %v782
  %v794 = vsel %vm161, %v782, %v784
  %v795 = vmul.f32 %v176, %v794
  %v796 = vmul.f32 %v181, %v786
  %v797 = vmul.f32 %v186, %v788
  %v798 = vmul.f32 %v191, %v789
  %v799 = vadd.f32 %v778, %v795
  %v800 = vadd.f32 %v779, %v796
  %v801 = vadd.f32 %v780, %v797
  %v802 = vadd.f32 %v781, %v798
  %v803 = vadd.f32 %v745, %v774
  %v804 = vadd.f32 %v746, %v775
  %v805 = vadd.f32 %v747, %v776
  %v806 = vadd.f32 %v748, %v777
  %v807 = vadd.f32 %v803, %v799
  %v808 = vadd.f32 %v804, %v800
  %v809 = vadd.f32 %v805, %v801
  %v810 = vadd.f32 %v806, %v802
  %v811 = vmul.f32 %v807, 0.33333334
  %v812 = vmul.f32 %v808, 0.33333334
  %v813 = vmul.f32 %v809, 0.33333334
  %v814 = vmul.f32 %v810, 0.33333334
  %v815 = vpack.c.bf16 %v812, %v811
  %v816 = vpack.c.bf16 %v814, %v813
  %v817 = vld [vmem:[%s9] sm:$0xf]
  %v818 = vld [vmem:[%s9 + $0x4] sm:$0xf]
  %v819 = vld [vmem:[%s9 + $0x8] sm:$0xf]
  %v820 = vld [vmem:[%s9 + $0xc] sm:$0xf]
  %v821 = vld [vmem:[%s9 + $0x10] sm:$0xf]
  %v822 = vld [vmem:[%s9 + $0x14] sm:$0xf]
  %v823 = vld [vmem:[%s9 + $0x18] sm:$0xf]
  %v824 = vld [vmem:[%s9 + $0x1c] sm:$0xf]
  %v825 = vld [vmem:[%s9 + $0x20] sm:$0xf]
  %v826 = vld [vmem:[%s9 + $0x24] sm:$0xf]
  %v827 = vld [vmem:[%s9 + $0x28] sm:$0xf]
  %v828 = vld [vmem:[%s9 + $0x2c] sm:$0xf]
  %v829 = vld [vmem:[%s9 + $0x30] sm:$0xf]
  %v830 = vld [vmem:[%s9 + $0x34] sm:$0xf]
  %v831 = vld [vmem:[%s9 + $0x38] sm:$0xf]
  %v832 = vld [vmem:[%s9 + $0x3c] sm:$0xf]
  %v833 = vld [vmem:[%s10] sm:$0x1]
  %v835 = vlaneseq
  %v836 = vshrl.u32 %v835, 7
  %v837 = vsub.s32 0, %v836
  %v838 = vrot.slane %v833, %v837
  %v856 = vunpack.c.l.b16 %v817
  %v857 = vunpack.c.l.b16 %v818
  %v858 = vunpack.c.l.b16 %v819
  %v859 = vunpack.c.l.b16 %v820
  %v860 = vunpack.c.l.b16 %v821
  %v861 = vunpack.c.l.b16 %v822
  %v862 = vunpack.c.l.b16 %v823
  %v863 = vunpack.c.l.b16 %v824
  %v864 = vunpack.c.l.b16 %v825
  %v865 = vunpack.c.l.b16 %v826
  %v866 = vunpack.c.l.b16 %v827
  %v867 = vunpack.c.l.b16 %v828
  %v868 = vunpack.c.l.b16 %v829
  %v869 = vunpack.c.l.b16 %v830
  %v870 = vunpack.c.l.b16 %v831
  %v871 = vunpack.c.l.b16 %v832
  %v872 = vpack.c.b16 %v857, %v856
  %v873 = vpack.c.b16 %v859, %v858
  %v874 = vpack.c.b16 %v861, %v860
  %v875 = vpack.c.b16 %v863, %v862
  %v876 = vpack.c.b16 %v865, %v864
  %v877 = vpack.c.b16 %v867, %v866
  %v878 = vpack.c.b16 %v869, %v868
  %v879 = vpack.c.b16 %v871, %v870
  %888 = vmatprep.subr.bf16.mxu0 0
  %889 = vmatpush1.bf16.msra.mxu0 %v879
  %890 = vmatprep.subr.bf16.mxu0 0
  %891 = vmatpush1.bf16.msra.mxu0 %v878
  %892 = vmatprep.subr.bf16.mxu0 0
  %893 = vmatpush1.bf16.msra.mxu0 %v877
  %894 = vmatprep.subr.bf16.mxu0 0
  %895 = vmatpush1.bf16.msra.mxu0 %v876
  %896 = vmatprep.subr.bf16.mxu0 0
  %897 = vmatpush1.bf16.msra.mxu0 %v875
  %898 = vmatprep.subr.bf16.mxu0 0
  %899 = vmatpush1.bf16.msra.mxu0 %v874
  %900 = vmatprep.subr.bf16.mxu0 0
  %901 = vmatpush1.bf16.msra.mxu0 %v873
  %902 = vmatprep.subr.bf16.mxu0 0
  %903 = vmatpush1.bf16.msra.mxu0 %v872
  %904 = vmatprep.subr.bf16.mxu0 0
  %905 = vmatpush2.bf16.msra.mxu0 0
  %906 = vmatprep.subr.bf16.mxu0 0
  %907 = vmatpush2.bf16.msra.mxu0 0
  %908 = vmatprep.subr.bf16.mxu0 0
  %909 = vmatpush2.bf16.msra.mxu0 0
  %910 = vmatprep.subr.bf16.mxu0 0
  %911 = vmatpush2.bf16.msra.mxu0 0
  %912 = vmatprep.subr.bf16.mxu0 0
  %913 = vmatpush2.bf16.msra.mxu0 0
  %914 = vmatprep.subr.bf16.mxu0 0
  %915 = vmatpush2.bf16.msra.mxu0 0
  %916 = vmatprep.subr.bf16.mxu0 0
  %917 = vmatpush2.bf16.msra.mxu0 0
  %918 = vmatprep.subr.bf16.mxu0 0
  %919 = vmatpush2.bf16.msra.mxu0 0
  %920 = vmatprep.mubr.bf16.mxu0 0
  %921 = vmatmul.mubr.bf16.gmra.mxu0 %v815
  %v922 = vpop.f32.mrf.mxu0
  %v923 = vadd.f32 %v838, %v922
  %v924 = vpop.f32.mrf.mxu0
  %v925 = vpop.f32.mrf.mxu0
  %v926 = vadd.f32 %v838, %v925
  %v927 = vpop.f32.mrf.mxu0
  %928 = vmatprep.mubr.bf16.mxu0 0
  %929 = vmatmul.mubr.bf16.gmra.mxu0 %v816
  %v930 = vpop.f32.mrf.mxu0
  %v931 = vadd.f32 %v838, %v930
  %v932 = vpop.f32.mrf.mxu0
  %v933 = vpop.f32.mrf.mxu0
  %v934 = vadd.f32 %v838, %v933
  %v935 = vpop.f32.mrf.mxu0
  %936 = vdwg.mxu0
  %v937 = vmax.f32 %v923, 0.0
  %v938 = vmax.f32 %v926, 0.0
  %v939 = vmax.f32 %v931, 0.0
  %v940 = vmax.f32 %v934, 0.0
  %v941 = vpack.c.bf16 %v938, %v937
  %v942 = vpack.c.bf16 %v940, %v939
  %v943 = vld [vmem:[%s11] sm:$0xf]
  %v944 = vld [vmem:[%s11 + $0x4] sm:$0xf]
  %v945 = vld [vmem:[%s11 + $0x8] sm:$0xf]
  %v946 = vld [vmem:[%s11 + $0xc] sm:$0xf]
  %v947 = vld [vmem:[%s11 + $0x10] sm:$0xf]
  %v948 = vld [vmem:[%s11 + $0x14] sm:$0xf]
  %v949 = vld [vmem:[%s11 + $0x18] sm:$0xf]
  %v950 = vld [vmem:[%s11 + $0x1c] sm:$0xf]
  %v951 = vld [vmem:[%s11 + $0x20] sm:$0xf]
  %v952 = vld [vmem:[%s11 + $0x24] sm:$0xf]
  %v953 = vld [vmem:[%s11 + $0x28] sm:$0xf]
  %v954 = vld [vmem:[%s11 + $0x2c] sm:$0xf]
  %v955 = vld [vmem:[%s11 + $0x30] sm:$0xf]
  %v956 = vld [vmem:[%s11 + $0x34] sm:$0xf]
  %v957 = vld [vmem:[%s11 + $0x38] sm:$0xf]
  %v958 = vld [vmem:[%s11 + $0x3c] sm:$0xf]
  %v959 = vld [vmem:[%s12] sm:$0x1]
  %v961 = vlaneseq
  %v962 = vshrl.u32 %v961, 7
  %v963 = vsub.s32 0, %v962
  %v964 = vrot.slane %v959, %v963
  %v982 = vunpack.c.l.b16 %v943
  %v983 = vunpack.c.l.b16 %v944
  %v984 = vunpack.c.l.b16 %v945
  %v985 = vunpack.c.l.b16 %v946
  %v986 = vunpack.c.l.b16 %v947
  %v987 = vunpack.c.l.b16 %v948
  %v988 = vunpack.c.l.b16 %v949
  %v989 = vunpack.c.l.b16 %v950
  %v990 = vunpack.c.l.b16 %v951
  %v991 = vunpack.c.l.b16 %v952
  %v992 = vunpack.c.l.b16 %v953
  %v993 = vunpack.c.l.b16 %v954
  %v994 = vunpack.c.l.b16 %v955
  %v995 = vunpack.c.l.b16 %v956
  %v996 = vunpack.c.l.b16 %v957
  %v997 = vunpack.c.l.b16 %v958
  %v998 = vpack.c.b16 %v983, %v982
  %v999 = vpack.c.b16 %v985, %v984
  %v1000 = vpack.c.b16 %v987, %v986
  %v1001 = vpack.c.b16 %v989, %v988
  %v1002 = vpack.c.b16 %v991, %v990
  %v1003 = vpack.c.b16 %v993, %v992
  %v1004 = vpack.c.b16 %v995, %v994
  %v1005 = vpack.c.b16 %v997, %v996
  %1014 = vmatprep.subr.bf16.mxu0 0
  %1015 = vmatpush1.bf16.msra.mxu0 %v1005
  %1016 = vmatprep.subr.bf16.mxu0 0
  %1017 = vmatpush1.bf16.msra.mxu0 %v1004
  %1018 = vmatprep.subr.bf16.mxu0 0
  %1019 = vmatpush1.bf16.msra.mxu0 %v1003
  %1020 = vmatprep.subr.bf16.mxu0 0
  %1021 = vmatpush1.bf16.msra.mxu0 %v1002
  %1022 = vmatprep.subr.bf16.mxu0 0
  %1023 = vmatpush1.bf16.msra.mxu0 %v1001
  %1024 = vmatprep.subr.bf16.mxu0 0
  %1025 = vmatpush1.bf16.msra.mxu0 %v1000
  %1026 = vmatprep.subr.bf16.mxu0 0
  %1027 = vmatpush1.bf16.msra.mxu0 %v999
  %1028 = vmatprep.subr.bf16.mxu0 0
  %1029 = vmatpush1.bf16.msra.mxu0 %v998
  %1030 = vmatprep.subr.bf16.mxu0 0
  %1031 = vmatpush2.bf16.msra.mxu0 0
  %1032 = vmatprep.subr.bf16.mxu0 0
  %1033 = vmatpush2.bf16.msra.mxu0 0
  %1034 = vmatprep.subr.bf16.mxu0 0
  %1035 = vmatpush2.bf16.msra.mxu0 0
  %1036 = vmatprep.subr.bf16.mxu0 0
  %1037 = vmatpush2.bf16.msra.mxu0 0
  %1038 = vmatprep.subr.bf16.mxu0 0
  %1039 = vmatpush2.bf16.msra.mxu0 0
  %1040 = vmatprep.subr.bf16.mxu0 0
  %1041 = vmatpush2.bf16.msra.mxu0 0
  %1042 = vmatprep.subr.bf16.mxu0 0
  %1043 = vmatpush2.bf16.msra.mxu0 0
  %1044 = vmatprep.subr.bf16.mxu0 0
  %1045 = vmatpush2.bf16.msra.mxu0 0
  %1046 = vmatprep.mubr.bf16.mxu0 0
  %1047 = vmatmul.mubr.bf16.gmra.mxu0 %v941
  %v1048 = vpop.f32.mrf.mxu0
  %v1049 = vadd.f32 %v964, %v1048
  %v1050 = vpop.f32.mrf.mxu0
  %v1051 = vpop.f32.mrf.mxu0
  %v1052 = vadd.f32 %v964, %v1051
  %v1053 = vpop.f32.mrf.mxu0
  %1054 = vmatprep.mubr.bf16.mxu0 0
  %1055 = vmatmul.mubr.bf16.gmra.mxu0 %v942
  %v1056 = vpop.f32.mrf.mxu0
  %v1057 = vadd.f32 %v964, %v1056
  %v1058 = vpop.f32.mrf.mxu0
  %v1059 = vpop.f32.mrf.mxu0
  %v1060 = vadd.f32 %v964, %v1059
  %v1061 = vpop.f32.mrf.mxu0
  %1062 = vdwg.mxu0
  %1063 = vst [vmem:[%s13] sm:$0xff] %v1049
  %1064 = vst [vmem:[%s13 + $0x8] sm:$0xff] %v1052
  %1065 = vst [vmem:[%s13 + $0x10] sm:$0xff] %v1057
  %1066 = vst [vmem:[%s13 + $0x18] sm:$0xff] %v1060
  // Predicated region
  $region54: #{keypoint_pipeline.1} parent=0 // pred_check
    _
  $region55: #{keypoint_pipeline.1} parent=0 // pred_check_branch
    %1068 = sbr.rel (0) target = $region57
  $region56: #{keypoint_pipeline.1} parent=0 // pred_region
    _
  $region57: #{keypoint_pipeline.1} parent=0 // pred_fallthru
    _
  // Predicated region
  $region58: #{keypoint_pipeline.1} parent=0 // pred_check
    _
  $region59: #{keypoint_pipeline.1} parent=0 // pred_check_branch
    %1070 = sbr.rel (0) target = $region61
  $region60: #{keypoint_pipeline.1} parent=0 // pred_region
    _
  $region61: #{keypoint_pipeline.1} parent=0 // pred_fallthru
    _

</llo_original>
